<compile_context>
chip_gen: v7x
topology: tpu7x:2x2x1
jax: 0.10.0
libtpu: 0.0.40
codegen_flags: <defaults>
</compile_context>

<pallas_src>
import functools

import jax
import jax.numpy as jnp
from jax.experimental import pallas as pl
from jax.experimental.pallas import tpu as pltpu


# ----------------------------- kernels -------------------------------------


def _stable_softplus(d):
    # softplus(d) = max(d, 0) + log1p(exp(-|d|)); never overflows in f32.
    return jnp.maximum(d, 0.0) + jnp.log1p(jnp.exp(-jnp.abs(d)))


def _combined_kernel(x_ref, o_ref, *, L):
    # x_ref: (tn, 2L) tile holding channel-0 then channel-1 lanes.
    x = x_ref[...]
    x0 = x[:, :L].astype(jnp.float32)
    x1 = x[:, L:].astype(jnp.float32)
    o_ref[...] = _stable_softplus(x1 - x0).astype(o_ref.dtype)


def _two_block_kernel(x0_ref, x1_ref, o_ref):
    # Two dense (tn, tl) tiles: channel 0 and channel 1 views of the same array.
    x0 = x0_ref[...].astype(jnp.float32)
    x1 = x1_ref[...].astype(jnp.float32)
    o_ref[...] = _stable_softplus(x1 - x0).astype(o_ref.dtype)


def _channels_3d_kernel(x_ref, o_ref):
    # Fallback for L % 128 != 0: (tn, 2, L) full-extent minor block.
    x = x_ref[...]
    x0 = x[:, 0, :].astype(jnp.float32)
    x1 = x[:, 1, :].astype(jnp.float32)
    o_ref[...] = _stable_softplus(x1 - x0).astype(o_ref.dtype)


# --------------------------- tiling helpers ---------------------------------


def _round_up(x, m):
    return ((x + m - 1) // m) * m


def _divisors_desc(m):
    ds = set()
    i = 1
    while i * i <= m:
        if m % i == 0:
            ds.add(i)
            ds.add(m // i)
        i += 1
    return sorted(ds, reverse=True)


def _vmem_plan():
    """(vmem_limit_bytes, tile_budget_bytes) sized per TPU generation."""
    try:
        cap = int(pltpu.get_tpu_info().vmem_capacity_bytes)
    except Exception:
        cap = 64 << 20  # conservative: works on v5e/v6e/v7x
    # v7x (64 MiB phys) -> 48 MiB limit; v5e/v6e (128 MiB) -> 96 MiB limit.
    limit = min(96 << 20, max(16 << 20, (cap * 3) // 4))
    budget = (limit * 4) // 5  # headroom for Mosaic internal scratch
    return limit, budget


def _pick_tiles(N, L, itemsize, budget):
    """Tile sizes for the aligned (L % 128 == 0) path.

    Per step VMEM = 3 tiles (2 in + 1 out) x 2 (double buffer) x tn*tl*itemsize.
    Grow tl (contiguous lane axis) first, then tn.
    """
    tn_min = 8 if N >= 8 else N

    def fits(tn, tl):
        return 6 * tn * tl * itemsize <= budget

    if fits(tn_min, L):
        tl = L
    else:
        tl = 128
        for d in _divisors_desc(L // 128):
            cand = 128 * d
            if fits(tn_min, cand):
                tl = cand
                break

    if N <= 8:
        tn = N
    else:
        tn_max = budget // (6 * itemsize * tl)
        tn = max(8, (tn_max // 8) * 8)
        tn = min(tn, _round_up(N, 8))
        # keep >= 2 blocks along N so both v7x TensorCores get work
        tn = min(tn, max(8, _round_up(-(-N // 2), 8)))
    return tn, tl


# ------------------------------ wrapper --------------------------------------


def new_loss(inp, target=None, *, _budget_override=None):
    """Pallas implementation of NewLoss.forward (target is unused, as in torch)."""
    N, C, L = inp.shape
    assert C >= 2, "NewLoss reads channels 0 and 1"
    itemsize = jnp.dtype(inp.dtype).itemsize

    limit, budget = _vmem_plan()
    if _budget_override is not None:
        budget = _budget_override

    cost = pl.CostEstimate(
        flops=5 * N * L,
        transcendentals=2 * N * L,
        bytes_accessed=3 * N * L * itemsize,
    )

    if L % 128 == 0:
        # Fast path: merge the contiguous (C, L) minor dims -> (N, C*L) for free;
        # channel c occupies lane-columns [c*L, (c+1)*L), so only channels 0/1
        # are ever DMA'd.
        x2d = inp.reshape(N, C * L)
        tn, tl = _pick_tiles(N, L, itemsize, budget)
        grid_n = pl.cdiv(N, tn)

        if tl == L:
            # One (tn, 2L) input DMA per step carrying both channels.
            grid = (grid_n,)
            in_specs = [pl.BlockSpec((tn, 2 * L), lambda i: (i, 0))]
            out_specs = pl.BlockSpec((tn, L), lambda i: (i, 0))
            kernel = functools.partial(_combined_kernel, L=L)
            args = (x2d,)
            sem = ("parallel",)
        else:
            off = L // tl  # lane-block offset of channel 1
            grid = (grid_n, L // tl)
            in_specs = [
                pl.BlockSpec((tn, tl), lambda i, j: (i, j)),
                pl.BlockSpec((tn, tl), lambda i, j: (i, j + off)),
            ]
            out_specs = pl.BlockSpec((tn, tl), lambda i, j: (i, j))
            kernel = _two_block_kernel
            args = (x2d, x2d)
            sem = ("parallel", "parallel")

        return pl.pallas_call(
            kernel,
            out_shape=jax.ShapeDtypeStruct((N, L), inp.dtype),
            grid_spec=pltpu.PrefetchScalarGridSpec(
                num_scalar_prefetch=0,
                grid=grid,
                in_specs=in_specs,
                out_specs=out_specs,
            ),
            compiler_params=pltpu.CompilerParams(
                dimension_semantics=sem,
                vmem_limit_bytes=limit,
            ),
            cost_estimate=cost,
        )(*args)

    # Unaligned-L path: full-extent (tn, 2, L) minor block (always legal),
    # still pipelined over N; only channels 0/1 are moved.
    x = inp if C == 2 else inp[:, :2, :]
    Lp = _round_up(L, 128)
    # double-buffered bytes per N-row: padded (8, Lp) input slab + (., Lp) output
    per_row = 2 * (8 * Lp + Lp) * itemsize
    if N <= 8:
        tn = N
    else:
        tn = max(8, min(_round_up(N, 8), ((budget // per_row) // 8) * 8))
        tn = min(tn, max(8, _round_up(-(-N // 2), 8)))

    return pl.pallas_call(
        _channels_3d_kernel,
        out_shape=jax.ShapeDtypeStruct((N, L), inp.dtype),
        grid_spec=pltpu.PrefetchScalarGridSpec(
            num_scalar_prefetch=0,
            grid=(pl.cdiv(N, tn),),
            in_specs=[pl.BlockSpec((tn, 2, L), lambda i: (i, 0, 0))],
            out_specs=pl.BlockSpec((tn, L), lambda i: (i, 0)),
        ),
        compiler_params=pltpu.CompilerParams(
            dimension_semantics=("parallel",),
            vmem_limit_bytes=limit,
        ),
        cost_estimate=cost,
    )(x)


def new_loss_ref(inp):
    # Exact reference math from the PyTorch module.
    x0 = inp[:, 0]
    x1 = inp[:, 1]
    return -x0 + jnp.log(jnp.exp(x0) + jnp.exp(x1))


if __name__ == "__main__":
    key = jax.random.PRNGKey(0)
    k1, k2, k3, k4, k5 = jax.random.split(key, 5)

    # 1) Aligned fast path (single combined DMA per step); C > 2 so only
    #    channels 0/1 are ever moved.  target exists in torch but is unused.
    x1 = jax.random.normal(k1, (16, 4, 256), dtype=jnp.float32)
    t1 = jax.random.randint(k2, (16, 256), 0, 2)
    o1 = jax.block_until_ready(new_loss(x1, t1))
    assert o1.shape == (16, 256)
    assert jnp.allclose(o1, new_loss_ref(x1), atol=1e-5, rtol=1e-5)

    # 2) Aligned path with ragged N (not a multiple of 8).
    x2 = jax.random.normal(k3, (12, 2, 128), dtype=jnp.float32)
    o2 = jax.block_until_ready(new_loss(x2))
    assert jnp.allclose(o2, new_loss_ref(x2), atol=1e-5, rtol=1e-5)

    # 3) Aligned path forced onto the two-BlockSpec lane-offset variant
    #    (tiny budget override -> tl < L).
    x3 = jax.random.normal(k4, (8, 2, 512), dtype=jnp.float32)
    o3 = jax.block_until_ready(new_loss(x3, _budget_override=6 * 8 * 256 * 4))
    assert jnp.allclose(o3, new_loss_ref(x3), atol=1e-5, rtol=1e-5)

    # 4) Unaligned-L fallback path (L % 128 != 0, N < 8, C > 2).
    x4 = jax.random.normal(k5, (5, 3, 96), dtype=jnp.float32)
    o4 = jax.block_until_ready(new_loss(x4))
    assert jnp.allclose(o4, new_loss_ref(x4), atol=1e-5, rtol=1e-5)

    print("KERNEL_OK")
</pallas_src>

<mosaic_0001>
module attributes {stable_mosaic.version = 11 : i64} {
  func.func @_combined_kernel(%arg0: i32, %arg1: memref<8x512xf32, #tpu.memory_space<vmem>>, %arg2: memref<8x256xf32, #tpu.memory_space<vmem>>) attributes {dimension_semantics = [#tpu.dimension_semantics<parallel>], iteration_bounds = array<i64: 2>, scalar_prefetch = 0 : i64, scratch_operands = 0 : i64, tpu.core_type = #tpu.core_type<tc>, window_params = [{transform_indices = @transform_0, window_bounds = array<i64: 8, 512>}, {transform_indices = @transform_1, window_bounds = array<i64: 8, 256>}]} {
    %c0 = arith.constant 0 : index
    %c0_0 = arith.constant 0 : index
    %0 = vector.load %arg1[%c0, %c0_0] : memref<8x512xf32, #tpu.memory_space<vmem>>, vector<8x512xf32>
    %1 = vector.extract_strided_slice %0 {offsets = [0, 0], sizes = [8, 256], strides = [1, 1]} : vector<8x512xf32> to vector<8x256xf32>
    %2 = vector.extract_strided_slice %0 {offsets = [0, 256], sizes = [8, 256], strides = [1, 1]} : vector<8x512xf32> to vector<8x256xf32>
    %3 = arith.subf %2, %1 : vector<8x256xf32>
    %cst = arith.constant 0.000000e+00 : f32
    %4 = vector.broadcast %cst : f32 to vector<8x256xf32>
    %5 = arith.maximumf %3, %4 : vector<8x256xf32>
    %6 = math.absf %3 : vector<8x256xf32>
    %cst_1 = arith.constant 0.000000e+00 : f32
    %7 = vector.broadcast %cst_1 : f32 to vector<8x256xf32>
    %8 = arith.subf %7, %6 : vector<8x256xf32>
    %9 = math.exp %8 : vector<8x256xf32>
    %10 = math.log1p %9 : vector<8x256xf32>
    %11 = arith.addf %5, %10 : vector<8x256xf32>
    %c0_2 = arith.constant 0 : index
    %c0_3 = arith.constant 0 : index
    %12 = vector.load %arg2[%c0_2, %c0_3] : memref<8x256xf32, #tpu.memory_space<vmem>>, vector<8x256xf32>
    tpu.vector_store %arg2[%c0_2, %c0_3], %11 {strides = array<i32>} : memref<8x256xf32, #tpu.memory_space<vmem>>, vector<8x256xf32>,
    return
  }
  func.func @transform_0(%arg0: i32) -> (i32, i32) {
    %c0_i32 = arith.constant 0 : i32
    %c0_i32_0 = arith.constant 0 : i32
    return %arg0, %c0_i32 : i32, i32
  }
  func.func @transform_1(%arg0: i32) -> (i32, i32) {
    %c0_i32 = arith.constant 0 : i32
    %c0_i32_0 = arith.constant 0 : i32
    return %arg0, %c0_i32 : i32, i32
  }
}

</mosaic_0001>

<llo_original>
// kernel: tpu_custom_call.1
$region0: #{tpu_custom_call.1}
  #allocation0 [shape = 'u32[]', space=smem, size = 0x4, offset = 0x4, fixed_abs, tag = 'smem constant byte address 0x4 - core index']
  #allocation1 [shape = 'u32[144,128]{1,0:T(1,128)}', space=vmem, size = 0x12000, scoped, tag = 'internal scratch']
  %s0 = inlined_call_operand.hbm [shape: f32[16,1024], index: 0, kind: input, shape index: {}]
  %s1 = inlined_call_operand.hbm [shape: f32[16,256], index: 1, kind: output, shape index: {}]
  %s2 = sld [smem:[#allocation0]]
  $region41: #{tpu_custom_call.1} parent=0
    _
  %s4 = ssub.s32 1, %s2
  %s5 = scalar_select 0, %s4, %s2
  $region1: #{tpu_custom_call.1} parent=0
    #allocation2 [shape = 'u8[32768]{0}', space=vmem, size = 0x8000, scoped, tag = 'input window, operand 0']
    #allocation3 [shape = 's32[2]{0}', space=sflag, size = 0x8, scoped, tag = 'scoped memory for tpu_custom_call.1']
    #allocation4 [shape = 's32[2]{0}', space=sflag, size = 0x8, scoped, tag = 'scoped memory for tpu_custom_call.1']
    #allocation5 [shape = 'u8[16384]{0}', space=vmem, size = 0x4000, scoped, tag = 'output window, operand 0']
    %6 = vsyncpa [#allocation3], 0
    %s7 = scalar_lea.sflag [#allocation3], 1
    %8 = vsyncpa %s7, 0
    %9 = vsyncpa [#allocation4], 0
    %s10 = scalar_lea.sflag [#allocation4], 1
    %11 = vsyncpa %s10, 0
    loop: start=0, step=1, limit=4
    $region2: #{tpu_custom_call.1} parent=1 // loop_pre_header
      _
    $region3: #{tpu_custom_call.1} parent=1 // loop_header
      %s13 = sphi 0, %s17
      %p14 = scmp.ge.s32.totalorder %s13, 4
      %s23 = sphi 0, %s25
      %s26 = sphi 0, %s23
      %s27 = sphi 0, %s26
      %s43 = sphi 0, %s27
      %s49 = sphi 0, %s51
      %s52 = sphi 0, %s49
      %s53 = sphi 0, %s52
      %s69 = sphi 0, %s53
    $region4: #{tpu_custom_call.1} parent=1 // loop_header_branch
      %16 = sbr.rel (%p14) target = $region8
    $region5: #{tpu_custom_call.1} parent=1 // loop_body
      %s18 = ssub.s32 %s13, 1
      %s19 = ssub.s32 %s13, 2
      %s20 = sadd.s32 %s13, 1
      %s21 = ssub.s32 %s13, %s20
      %p22 = scmp.eq.s32.totalorder %s21, 0
      %s24 = sadd.s32 %s23, 1
      %s25 = scalar_select %p22, %s23, %s24
      %p28 = pneg %p22
      %p29 = scmp.eq.s32.totalorder %s13, 1
      %p30 = por %p28, %p29
      %p31 = scmp.ne.s32.totalorder %s23, %s26
      %p32 = scmp.eq.s32.totalorder %s13, 0
      %p33 = por %p31, %p32
      %p34 = scmp.ne.s32.totalorder %s23, %s26
      %p35 = scmp.eq.s32.totalorder %s18, 1
      %p36 = por %p34, %p35
      %p37 = scmp.ne.s32.totalorder %s26, %s27
      %p38 = scmp.eq.s32.totalorder %s18, 0
      %p39 = por %p37, %p38
      %p40 = scmp.ne.s32.totalorder %s26, %s27
      %p41 = scmp.eq.s32.totalorder %s19, 1
      %p42 = por %p40, %p41
      %p44 = scmp.ne.s32.totalorder %s27, %s43
      %p45 = scmp.eq.s32.totalorder %s19, 0
      %p46 = por %p44, %p45
      %s47 = ssub.s32 %s13, %s20
      %p48 = scmp.eq.s32.totalorder %s47, 0
      %s50 = sadd.s32 %s49, 1
      %s51 = scalar_select %p48, %s49, %s50
      %p54 = pneg %p48
      %p55 = scmp.eq.s32.totalorder %s13, 1
      %p56 = por %p54, %p55
      %p57 = scmp.ne.s32.totalorder %s49, %s52
      %p58 = scmp.eq.s32.totalorder %s13, 0
      %p59 = por %p57, %p58
      %p60 = scmp.ne.s32.totalorder %s49, %s52
      %p61 = scmp.eq.s32.totalorder %s18, 1
      %p62 = por %p60, %p61
      %p63 = scmp.ne.s32.totalorder %s52, %s53
      %p64 = scmp.eq.s32.totalorder %s18, 0
      %p65 = por %p63, %p64
      %p66 = scmp.ne.s32.totalorder %s52, %s53
      %p67 = scmp.eq.s32.totalorder %s19, 1
      %p68 = por %p66, %p67
      %p70 = scmp.ne.s32.totalorder %s53, %s69
      %p71 = scmp.eq.s32.totalorder %s19, 0
      %p72 = por %p70, %p71
      %p73 = scmp.le.s32.totalorder 1, %s13
      %p74 = scmp.lt.s32.totalorder %s13, 3
      %p75 = pnand %p73, %p74
      %p76 = pneg %p75
      // Predicated region
      $region9: #{tpu_custom_call.1} parent=5 // pred_check
        _
      $region10: #{tpu_custom_call.1} parent=5 // pred_check_branch
        %78 = sbr.rel (%p75) target = $region12
      $region11: #{tpu_custom_call.1} parent=5 // pred_region
        %s79 = ssub.s32 %s13, 1
      $region12: #{tpu_custom_call.1} parent=5 // pred_fallthru
        _
      %p80 = scmp.lt.s32.totalorder %s13, 2
      // Predicated region
      $region13: #{tpu_custom_call.1} parent=5 // pred_check
        %p81 = pneg %p80
      $region14: #{tpu_custom_call.1} parent=5 // pred_check_branch
        %83 = sbr.rel (%p81) target = $region16
      $region15: #{tpu_custom_call.1} parent=5 // pred_region
        // Predicated region
        $region17: #{tpu_custom_call.1} parent=15 // pred_check
          %p84 = pneg %p33
        $region18: #{tpu_custom_call.1} parent=15 // pred_check_branch
          %86 = sbr.rel (%p84) target = $region20
        $region19: #{tpu_custom_call.1} parent=15 // pred_region
          %s87 = sand.u32 %s23, 1
          %s88 = scalar_lea.sflag [#allocation3], %s87
          %s89 = sand.u32 %s23, 1
          %s90 = smul.addr %s89, 32
          %s91 = scalar_lea.vmem [#allocation2], %s90
          %s93 = ssub.s32 512, 512
          %94 = vsyncadd %s88, %s93
          %s95 = smul.addr %s13, 8
          %s96 = smul.addr %s95, 128
          %s97 = scalar_lea.hbm %s0, %s96
          %s99 = sshll.u32 %s91, 4
          %s100 = int_to_ptr.vmem [resolvable:$true] %s99
          %102 = dma.hbm_to_vmem [thread:$0]  %s97, 512, %s100, %s88
        $region20: #{tpu_custom_call.1} parent=15 // pred_fallthru
          _
      $region16: #{tpu_custom_call.1} parent=5 // pred_fallthru
        _
      %p103 = scmp.le.s32.totalorder 1, %s13
      %p104 = scmp.lt.s32.totalorder %s13, 3
      %p105 = pnand %p103, %p104
      %p106 = pneg %p105
      // Predicated region
      $region21: #{tpu_custom_call.1} parent=5 // pred_check
        _
      $region22: #{tpu_custom_call.1} parent=5 // pred_check_branch
        %108 = sbr.rel (%p105) target = $region24
      $region23: #{tpu_custom_call.1} parent=5 // pred_region
        %s109 = ssub.s32 %s13, 1
        %s110 = sand.u32 %s26, 1
        %s111 = scalar_lea.sflag [#allocation3], %s110
        %s112 = sand.u32 %s26, 1
        %s113 = smul.addr %s112, 32
        %s114 = scalar_lea.vmem [#allocation2], %s113
        // Predicated region
        $region25: #{tpu_custom_call.1} parent=23 // pred_check
          %p115 = pneg %p39
        $region26: #{tpu_custom_call.1} parent=23 // pred_check_branch
          %117 = sbr.rel (%p115) target = $region28
        $region27: #{tpu_custom_call.1} parent=23 // pred_region
          %118 = dma.done %s111, 512
        $region28: #{tpu_custom_call.1} parent=23 // pred_fallthru
          _
        %s119 = sand.u32 %s26, 1
        %s120 = scalar_lea.sflag [#allocation3], %s119
        %s121 = sand.u32 %s26, 1
        %s122 = smul.addr %s121, 32
        %s123 = scalar_lea.vmem [#allocation2], %s122
        %p124 = pneg %p39
        %p125 = pneg %p36
        %p126 = pneg %p65
        %p127 = pneg %p62
        %s128 = sand.u32 %s52, 1
        %s129 = scalar_lea.sflag [#allocation4], %s128
        %s130 = sand.u32 %s52, 1
        %s131 = smul.addr %s130, 16
        %s132 = scalar_lea.vmem [#allocation5], %s131
        %v133 = vld [vmem:[%s114] sm:$0xff]
        %v134 = vld [vmem:[%s114 + $0x8] sm:$0xff]
        %v135 = vld [vmem:[%s114 + $0x10] sm:$0xff]
        %v136 = vld [vmem:[%s114 + $0x18] sm:$0xff]
        %v137 = vsub.f32 %v135, %v133
        %v138 = vsub.f32 %v136, %v134
        %v139 = vmax.f32 %v137, 0.0
        %v140 = vmax.f32 %v138, 0.0
        %v141 = vand.u32 2147483647, %v137
        %v142 = vand.u32 2147483647, %v138
        %v143 = vsub.f32 0.0, %v141
        %v144 = vsub.f32 0.0, %v142
        %v145 = vmul.f32 %v143, 1.442695
        %v146 = vpow.pop %v145
        %v147 = vmul.f32 %v144, 1.442695
        %v148 = vpow.pop %v147
        %v149 = vadd.f32 %v146, 1.0
        %v150 = vlog2.pop %v149
        %v151 = vmul.f32 %v150, 0.6931472
        %v152 = vmul.f32 -0.5, %v146
        %v153 = vadd.f32 %v152, 1.0
        %v154 = vmul.f32 %v153, %v146
        %v155 = vand.u32 2147483647, %v146
        %vm156 = vcmp.lt.f32.partialorder %v155, 0.0004427343
        %v157 = vsel %vm156, %v154, %v151
        %v158 = vadd.f32 %v148, 1.0
        %v159 = vlog2.pop %v158
        %v160 = vmul.f32 %v159, 0.6931472
        %v161 = vmul.f32 -0.5, %v148
        %v162 = vadd.f32 %v161, 1.0
        %v163 = vmul.f32 %v162, %v148
        %v164 = vand.u32 2147483647, %v148
        %vm165 = vcmp.lt.f32.partialorder %v164, 0.0004427343
        %v166 = vsel %vm165, %v163, %v160
        %v167 = vadd.f32 %v139, %v157
        %v168 = vadd.f32 %v140, %v166
        %169 = vst [vmem:[%s132] sm:$0xff] %v167
        %170 = vst [vmem:[%s132 + $0x8] sm:$0xff] %v168
        %s171 = sand.u32 %s52, 1
        %s172 = scalar_lea.sflag [#allocation4], %s171
        %s173 = sand.u32 %s52, 1
        %s174 = smul.addr %s173, 16
        %s175 = scalar_lea.vmem [#allocation5], %s174
        // Predicated region
        $region29: #{tpu_custom_call.1} parent=23 // pred_check
          %p176 = pneg %p62
        $region30: #{tpu_custom_call.1} parent=23 // pred_check_branch
          %178 = sbr.rel (%p176) target = $region32
        $region31: #{tpu_custom_call.1} parent=23 // pred_region
          %s180 = ssub.s32 256, 256
          %181 = vsyncadd %s172, %s180
          %s182 = smul.addr %s18, 2
          %s183 = smul.addr %s182, 128
          %s184 = scalar_lea.hbm %s1, %s183
          %s186 = sshll.u32 %s175, 4
          %s187 = int_to_ptr.vmem [resolvable:$true] %s186
          %189 = dma.vmem_to_hbm [thread:$0]  %s187, 256, %s184, %s172
        $region32: #{tpu_custom_call.1} parent=23 // pred_fallthru
          _
      $region24: #{tpu_custom_call.1} parent=5 // pred_fallthru
        _
      %p190 = scmp.le.s32.totalorder 2, %s13
      // Predicated region
      $region33: #{tpu_custom_call.1} parent=5 // pred_check
        %p191 = pneg %p190
      $region34: #{tpu_custom_call.1} parent=5 // pred_check_branch
        %193 = sbr.rel (%p191) target = $region36
      $region35: #{tpu_custom_call.1} parent=5 // pred_region
        %s194 = ssub.s32 %s13, 2
        // Predicated region
        $region37: #{tpu_custom_call.1} parent=35 // pred_check
          %p195 = pneg %p68
        $region38: #{tpu_custom_call.1} parent=35 // pred_check_branch
          %197 = sbr.rel (%p195) target = $region40
        $region39: #{tpu_custom_call.1} parent=35 // pred_region
          %s198 = sand.u32 %s53, 1
          %s199 = scalar_lea.sflag [#allocation4], %s198
          %s200 = sand.u32 %s53, 1
          %s201 = smul.addr %s200, 16
          %s202 = scalar_lea.vmem [#allocation5], %s201
          %203 = dma.done %s199, 256
        $region40: #{tpu_custom_call.1} parent=35 // pred_fallthru
          _
      $region36: #{tpu_custom_call.1} parent=5 // pred_fallthru
        _
    $region6: #{tpu_custom_call.1} parent=1 // loop_footer
      %s17 = sadd.s32 1, %s13
    $region7: #{tpu_custom_call.1} parent=1 // loop_footer_branch
      %12 = sbr.rel target = $region3
    $region8: #{tpu_custom_call.1} parent=1 // loop_exit
      _
    %204 = vsyncpa [#allocation3], 1
    %s205 = scalar_lea.sflag [#allocation3], 1
    %206 = vsyncpa %s205, 1
    %207 = vsyncpa [#allocation4], 1
    %s208 = scalar_lea.sflag [#allocation4], 1
    %209 = vsyncpa %s208, 1

</llo_original>
